<compile_context>
chip_gen: v7x
topology: tpu7x:2x2x1
jax: 0.10.0
libtpu: 0.0.40
codegen_flags: <defaults>
</compile_context>

<pallas_src>
import jax
import jax.numpy as jnp
from jax.experimental import pallas as pl
from jax.experimental.pallas import tpu as pltpu


def _round_up(x, m):
    return pl.cdiv(x, m) * m


# ------------------------------ fused kernel -------------------------------

def _gcn_fused_kernel(dvec_ref, a_ref, x_ref, w_ref, b_ref, h_ref):
    """H = diag(d) @ A @ diag(d) @ X @ W + b for one batch tile (VMEM-resident).

    Reordered as  h = d ⊙ (A @ (d ⊙ (X @ W))) + b  so the only large matmul is
    the folded lane-dense (BB*Cp, Dinp) @ (Dinp, Doutp), and the degree
    normalization never touches the MXU.
    """
    bb, cp, dinp = x_ref.shape
    doutp = w_ref.shape[1]

    # Big MXU matmul first: fold (BB, Cp) into sublanes -> M = BB*Cp.
    xw = jnp.dot(x_ref[...].reshape(bb * cp, dinp), w_ref[...],
                 preferred_element_type=jnp.float32)            # [BB*Cp, Doutp] f32
    xw = xw.reshape(bb, cp, doutp)

    dvec = dvec_ref[...]                                        # [BB, Cp, 1] f32
    t = (dvec * xw).astype(a_ref.dtype)                         # inner diag(d) scale (VPU)

    # Small batched matmul A @ (d ⊙ XW): K = Cp, N = Doutp, bf16 ops, f32 acc.
    u = jnp.einsum("bij,bjd->bid", a_ref[...], t,
                   preferred_element_type=jnp.float32)          # [BB, Cp, Doutp] f32

    h_ref[...] = dvec * u + b_ref[...]                          # outer diag(d) + bias


# ------------------------------ python wrappers ------------------------------

def init_graph_conv_params(w, b, *, mxu_dtype=jnp.bfloat16):
    """Pad/cast self.W's weights ONCE (hoisted out of the per-call hot path)."""
    din, dout = w.shape
    dinp, doutp = _round_up(din, 128), _round_up(dout, 128)
    w_p = jnp.pad(w.astype(mxu_dtype), ((0, dinp - din), (0, doutp - dout)))
    b_p = jnp.pad(b.astype(jnp.float32).reshape(1, dout),
                  ((0, 0), (0, doutp - dout)))
    return w_p, b_p, dout


def graph_conv_layer(x, con_node_adj, degree_matrix, params, *, block_b=None,
                     mxu_dtype=jnp.bfloat16):
    """GraphConvLayer.forward.

    x             : [B, C, Din]   node features (bert_con_node_tokens)
    con_node_adj  : [B, C, C]
    degree_matrix : [B, C, C]     D^-1/2 normalizer. Contract: diagonal (as in
                                  the reference construction); only its
                                  diagonal is used.
    params        : (w_p, b_p, dout) from init_graph_conv_params
    returns (H [B, C, Dout] f32, con_node_adj)  -- adjacency is a pass-through.
    """
    # TODO(synk): gate the diagonal-degree fast path if a caller ever passes a
    # non-diagonal normalization matrix (the reference D^-1/2 is diagonal).
    w_p, b_p, dout = params
    B, C, din = x.shape
    dinp, doutp = w_p.shape

    Cp = _round_up(C, 8)                     # sublane-aligned node dim
    if block_b is None:
        block_b = B                          # grid=(1,): overhead-bound regime
    Bp = _round_up(B, block_b)

    dvec = jnp.diagonal(degree_matrix, axis1=1, axis2=2).astype(jnp.float32)   # [B, C]
    dvec_p = jnp.pad(dvec[..., None], ((0, Bp - B), (0, Cp - C), (0, 0)))      # [Bp, Cp, 1]
    a_p = jnp.pad(con_node_adj.astype(mxu_dtype),
                  ((0, Bp - B), (0, Cp - C), (0, Cp - C)))                     # [Bp, Cp, Cp]
    x_p = jnp.pad(x.astype(mxu_dtype),
                  ((0, Bp - B), (0, Cp - C), (0, dinp - din)))                 # [Bp, Cp, Dinp]

    grid = (Bp // block_b,)
    h_p = pl.pallas_call(
        _gcn_fused_kernel,
        out_shape=jax.ShapeDtypeStruct((Bp, Cp, doutp), jnp.float32),
        grid=grid,
        in_specs=[
            pl.BlockSpec((block_b, Cp, 1), lambda i: (i, 0, 0)),      # diag(D^-1/2)
            pl.BlockSpec((block_b, Cp, Cp), lambda i: (i, 0, 0)),     # A
            pl.BlockSpec((block_b, Cp, dinp), lambda i: (i, 0, 0)),   # X
            pl.BlockSpec((dinp, doutp), lambda i: (0, 0)),            # W
            pl.BlockSpec((1, doutp), lambda i: (0, 0)),               # b
        ],
        out_specs=pl.BlockSpec((block_b, Cp, doutp), lambda i: (i, 0, 0)),
        compiler_params=pltpu.CompilerParams(
            dimension_semantics=("parallel",)),
    )(dvec_p, a_p, x_p, w_p, b_p)

    H = h_p[:B, :C, :dout]
    return H, con_node_adj


# ---------------------------------- main ------------------------------------

if __name__ == "__main__":
    # Shapes consistent with the module's own comments ("8 x 12 x 200").
    B, C, Din, Dout = 8, 12, 200, 64

    key = jax.random.PRNGKey(0)
    kx, ka, kw, kb = jax.random.split(key, 4)

    x = jax.random.normal(kx, (B, C, Din), jnp.float32)

    adj = (jax.random.uniform(ka, (B, C, C)) < 0.4).astype(jnp.float32)
    adj = jnp.maximum(adj, jnp.swapaxes(adj, 1, 2))                      # symmetric
    adj = jnp.maximum(adj, jnp.eye(C, dtype=jnp.float32)[None])          # self loops
    deg = adj.sum(-1)
    degree_matrix = ((1.0 / jnp.sqrt(deg))[:, :, None]
                     * jnp.eye(C, dtype=jnp.float32)[None])              # diagonal D^-1/2

    w = jax.random.normal(kw, (Din, Dout), jnp.float32) * 0.05
    b = jax.random.normal(kb, (Dout,), jnp.float32) * 0.05

    params = init_graph_conv_params(w, b)            # padded / cast exactly once
    H, adj_out = graph_conv_layer(x, adj, degree_matrix, params)
    H = jax.block_until_ready(H)

    # Pure-JAX f32 reference of the original forward (full bmm chain).
    s_ref = jnp.einsum("bij,bjk->bik", degree_matrix, adj)
    s_ref = jnp.einsum("bij,bjk->bik", s_ref, degree_matrix)
    h_ref = jnp.einsum("bij,bjk->bik", s_ref, x) @ w + b

    assert H.shape == (B, C, Dout)
    assert adj_out.shape == (B, C, C)
    assert bool(jnp.all(jnp.isfinite(H)))
    err = float(jnp.max(jnp.abs(H - h_ref)))
    scale = float(jnp.max(jnp.abs(h_ref)))
    assert err <= 5e-2 * scale + 1e-3, (err, scale)      # bf16-MXU tolerance
    assert bool(jnp.all(adj_out == adj))
    print("KERNEL_OK")
</pallas_src>

<mosaic_0001>
module attributes {stable_mosaic.version = 11 : i64} {
  func.func @_gcn_fused_kernel(%arg0: i32, %arg1: memref<8x16x1xf32, #tpu.memory_space<vmem>>, %arg2: memref<8x16x16xbf16, #tpu.memory_space<vmem>>, %arg3: memref<8x16x256xbf16, #tpu.memory_space<vmem>>, %arg4: memref<256x128xbf16, #tpu.memory_space<vmem>>, %arg5: memref<1x128xf32, #tpu.memory_space<vmem>>, %arg6: memref<8x16x128xf32, #tpu.memory_space<vmem>>) attributes {dimension_semantics = [#tpu.dimension_semantics<parallel>], iteration_bounds = array<i64: 1>, scalar_prefetch = 0 : i64, scratch_operands = 0 : i64, tpu.core_type = #tpu.core_type<tc>, window_params = [{transform_indices = @transform_0, window_bounds = array<i64: 8, 16, 1>}, {transform_indices = @transform_1, window_bounds = array<i64: 8, 16, 16>}, {transform_indices = @transform_2, window_bounds = array<i64: 8, 16, 256>}, {pipeline_mode = #tpu.pipeline_mode<synchronous>, transform_indices = @transform_3, window_bounds = array<i64: 256, 128>}, {pipeline_mode = #tpu.pipeline_mode<synchronous>, transform_indices = @transform_4, window_bounds = array<i64: 1, 128>}, {transform_indices = @transform_5, window_bounds = array<i64: 8, 16, 128>}]} {
    %c0 = arith.constant 0 : index
    %c0_0 = arith.constant 0 : index
    %c0_1 = arith.constant 0 : index
    %0 = vector.load %arg3[%c0, %c0_0, %c0_1] : memref<8x16x256xbf16, #tpu.memory_space<vmem>>, vector<8x16x256xbf16>
    %1 = vector.shape_cast %0 : vector<8x16x256xbf16> to vector<128x256xbf16>
    %c0_2 = arith.constant 0 : index
    %c0_3 = arith.constant 0 : index
    %2 = vector.load %arg4[%c0_2, %c0_3] : memref<256x128xbf16, #tpu.memory_space<vmem>>, vector<256x128xbf16>
    %cst = arith.constant dense<0.000000e+00> : vector<128x128xf32>
    %3 = tpu.matmul %1, %2, %cst {dimension_numbers = #tpu.dot_dimension_numbers<[1], [0], [0], [1], [0, 0, 1, 1], [], []>} : vector<128x256xbf16>, vector<256x128xbf16>, vector<128x128xf32> -> vector<128x128xf32>
    %4 = vector.shape_cast %3 : vector<128x128xf32> to vector<8x16x128xf32>
    %c0_4 = arith.constant 0 : index
    %c0_5 = arith.constant 0 : index
    %c0_6 = arith.constant 0 : index
    %5 = vector.load %arg1[%c0_4, %c0_5, %c0_6] : memref<8x16x1xf32, #tpu.memory_space<vmem>>, vector<8x16x1xf32>
    %6 = vector.broadcast %5 : vector<8x16x1xf32> to vector<8x16x128xf32>
    %7 = arith.mulf %6, %4 : vector<8x16x128xf32>
    %8 = arith.truncf %7 : vector<8x16x128xf32> to vector<8x16x128xbf16>
    %c0_7 = arith.constant 0 : index
    %c0_8 = arith.constant 0 : index
    %c0_9 = arith.constant 0 : index
    %9 = vector.load %arg2[%c0_7, %c0_8, %c0_9] : memref<8x16x16xbf16, #tpu.memory_space<vmem>>, vector<8x16x16xbf16>
    "tpu.trace_start"() <{level = 10 : i32, message = "bij,bjd->bid"}> : () -> ()
    %cst_10 = arith.constant dense<0.000000e+00> : vector<8x16x128xf32>
    %10 = tpu.matmul %9, %8, %cst_10 {dimension_numbers = #tpu.dot_dimension_numbers<[2], [1], [1], [2], [0, 0, 0, 1, 1, 2], [0], [0]>} : vector<8x16x16xbf16>, vector<8x16x128xbf16>, vector<8x16x128xf32> -> vector<8x16x128xf32>
    "tpu.trace_stop"() : () -> ()
    %11 = vector.broadcast %5 : vector<8x16x1xf32> to vector<8x16x128xf32>
    %12 = arith.mulf %11, %10 : vector<8x16x128xf32>
    %c0_11 = arith.constant 0 : index
    %c0_12 = arith.constant 0 : index
    %13 = vector.load %arg5[%c0_11, %c0_12] : memref<1x128xf32, #tpu.memory_space<vmem>>, vector<1x128xf32>
    %14 = vector.shape_cast %13 : vector<1x128xf32> to vector<1x1x128xf32>
    %15 = vector.broadcast %14 : vector<1x1x128xf32> to vector<8x16x128xf32>
    %16 = arith.addf %12, %15 : vector<8x16x128xf32>
    %c0_13 = arith.constant 0 : index
    %c0_14 = arith.constant 0 : index
    %c0_15 = arith.constant 0 : index
    %17 = vector.load %arg6[%c0_13, %c0_14, %c0_15] : memref<8x16x128xf32, #tpu.memory_space<vmem>>, vector<8x16x128xf32>
    tpu.vector_store %arg6[%c0_13, %c0_14, %c0_15], %16 {strides = array<i32>} : memref<8x16x128xf32, #tpu.memory_space<vmem>>, vector<8x16x128xf32>,
    return
  }
  func.func @transform_0(%arg0: i32) -> (i32, i32, i32) {
    %c0_i32 = arith.constant 0 : i32
    %c0_i32_0 = arith.constant 0 : i32
    %c0_i32_1 = arith.constant 0 : i32
    return %arg0, %c0_i32, %c0_i32_0 : i32, i32, i32
  }
  func.func @transform_1(%arg0: i32) -> (i32, i32, i32) {
    %c0_i32 = arith.constant 0 : i32
    %c0_i32_0 = arith.constant 0 : i32
    %c0_i32_1 = arith.constant 0 : i32
    return %arg0, %c0_i32, %c0_i32_0 : i32, i32, i32
  }
  func.func @transform_2(%arg0: i32) -> (i32, i32, i32) {
    %c0_i32 = arith.constant 0 : i32
    %c0_i32_0 = arith.constant 0 : i32
    %c0_i32_1 = arith.constant 0 : i32
    return %arg0, %c0_i32, %c0_i32_0 : i32, i32, i32
  }
  func.func @transform_3(%arg0: i32) -> (i32, i32) {
    %c0_i32 = arith.constant 0 : i32
    %c0_i32_0 = arith.constant 0 : i32
    %c0_i32_1 = arith.constant 0 : i32
    return %c0_i32, %c0_i32_0 : i32, i32
  }
  func.func @transform_4(%arg0: i32) -> (i32, i32) {
    %c0_i32 = arith.constant 0 : i32
    %c0_i32_0 = arith.constant 0 : i32
    %c0_i32_1 = arith.constant 0 : i32
    return %c0_i32, %c0_i32_0 : i32, i32
  }
  func.func @transform_5(%arg0: i32) -> (i32, i32, i32) {
    %c0_i32 = arith.constant 0 : i32
    %c0_i32_0 = arith.constant 0 : i32
    %c0_i32_1 = arith.constant 0 : i32
    return %arg0, %c0_i32, %c0_i32_0 : i32, i32, i32
  }
}

</mosaic_0001>

<llo_original>
// kernel: tpu_custom_call.1
$region0: #{tpu_custom_call.1}
  #allocation0 [shape = 'u32[]', space=smem, size = 0x4, offset = 0x4, fixed_abs, tag = 'smem constant byte address 0x4 - core index']
  #allocation1 [shape = 'u32[144,128]{1,0:T(1,128)}', space=vmem, size = 0x12000, scoped, tag = 'internal scratch']
  %s0 = inlined_call_operand.vmem [shape: f32[8,16,1], index: 0, kind: input, shape index: {}]
  %s1 = inlined_call_operand.hbm [shape: bf16[8,16,16], index: 1, kind: input, shape index: {}]
  %s2 = inlined_call_operand.vmem [shape: bf16[8,16,256], index: 2, kind: input, shape index: {}]
  %s3 = inlined_call_operand.hbm [shape: bf16[256,128], index: 3, kind: input, shape index: {}]
  %s4 = inlined_call_operand.vmem [shape: f32[1,128], index: 4, kind: input, shape index: {}]
  %s5 = inlined_call_operand.hbm [shape: f32[8,16,128], index: 5, kind: output, shape index: {}]
  %s6 = sld [smem:[#allocation0]]
  $region38: #{tpu_custom_call.1} parent=0
    _
  %s8 = ssub.s32 1, %s6
  %s9 = scalar_select 0, %s8, %s6
  $region1: #{tpu_custom_call.1} parent=0
    #allocation2 [shape = 'u8[32768]{0}', space=vmem, size = 0x8000, scoped, tag = 'input window, operand 1, single buffered']
    #allocation3 [shape = 's32[1]{0}', space=sflag, size = 0x4, scoped, tag = 'scoped memory for tpu_custom_call.1']
    #allocation4 [shape = 's32[1]{0}', space=sflag, size = 0x4, scoped, tag = 'scoped memory for tpu_custom_call.1']
    #allocation5 [shape = 'u8[65536]{0}', space=vmem, size = 0x10000, scoped, tag = 'input window, operand 3, single buffered']
    #allocation6 [shape = 's32[1]{0}', space=sflag, size = 0x4, scoped, tag = 'scoped memory for tpu_custom_call.1']
    #allocation7 [shape = 'u8[65536]{0}', space=vmem, size = 0x10000, scoped, tag = 'output window, operand 0, single buffered']
    %10 = vsyncpa [#allocation3], 0
    %11 = vsyncpa [#allocation6], 0
    %12 = vsyncpa [#allocation4], 0
    // Predicated region
    $region2: #{tpu_custom_call.1} parent=1 // pred_check
      _
    $region3: #{tpu_custom_call.1} parent=1 // pred_check_branch
      %14 = sbr.rel (0) target = $region5
    $region4: #{tpu_custom_call.1} parent=1 // pred_region
      _
    $region5: #{tpu_custom_call.1} parent=1 // pred_fallthru
      _
    // Predicated region
    $region6: #{tpu_custom_call.1} parent=1 // pred_check
      _
    $region7: #{tpu_custom_call.1} parent=1 // pred_check_branch
      %16 = sbr.rel (0) target = $region9
    $region8: #{tpu_custom_call.1} parent=1 // pred_region
      %s18 = ssub.s32 1024, 1024
      %19 = vsyncadd [#allocation3], %s18
      %s20 = sshll.u32 [#allocation2], 4
      %s21 = int_to_ptr.vmem [resolvable:$true] %s20
      %26 = dma.hbm_to_vmem [thread:$0]  %s1, 1024, %s21, [#allocation3], 64, 64, 4
    $region9: #{tpu_custom_call.1} parent=1 // pred_fallthru
      _
    // Predicated region
    $region10: #{tpu_custom_call.1} parent=1 // pred_check
      _
    $region11: #{tpu_custom_call.1} parent=1 // pred_check_branch
      %28 = sbr.rel (0) target = $region13
    $region12: #{tpu_custom_call.1} parent=1 // pred_region
      _
    $region13: #{tpu_custom_call.1} parent=1 // pred_fallthru
      _
    // Predicated region
    $region14: #{tpu_custom_call.1} parent=1 // pred_check
      _
    $region15: #{tpu_custom_call.1} parent=1 // pred_check_branch
      %30 = sbr.rel (0) target = $region17
    $region16: #{tpu_custom_call.1} parent=1 // pred_region
      %s32 = ssub.s32 2048, 2048
      %33 = vsyncadd [#allocation6], %s32
      %s34 = sshll.u32 [#allocation5], 4
      %s35 = int_to_ptr.vmem [resolvable:$true] %s34
      %40 = dma.hbm_to_vmem [thread:$0]  %s3, 2048, %s35, [#allocation6], 64, 64, 4
    $region17: #{tpu_custom_call.1} parent=1 // pred_fallthru
      _
    // Predicated region
    $region18: #{tpu_custom_call.1} parent=1 // pred_check
      _
    $region19: #{tpu_custom_call.1} parent=1 // pred_check_branch
      %42 = sbr.rel (0) target = $region21
    $region20: #{tpu_custom_call.1} parent=1 // pred_region
      _
    $region21: #{tpu_custom_call.1} parent=1 // pred_fallthru
      _
    // Predicated region
    $region22: #{tpu_custom_call.1} parent=1 // pred_check
      _
    $region23: #{tpu_custom_call.1} parent=1 // pred_check_branch
      %44 = sbr.rel (0) target = $region25
    $region24: #{tpu_custom_call.1} parent=1 // pred_region
      %45 = dma.done [#allocation3], 1024
    $region25: #{tpu_custom_call.1} parent=1 // pred_fallthru
      _
    // Predicated region
    $region26: #{tpu_custom_call.1} parent=1 // pred_check
      _
    $region27: #{tpu_custom_call.1} parent=1 // pred_check_branch
      %47 = sbr.rel (0) target = $region29
    $region28: #{tpu_custom_call.1} parent=1 // pred_region
      %48 = dma.done [#allocation6], 2048
    $region29: #{tpu_custom_call.1} parent=1 // pred_fallthru
      _
    %v50 = vld [vmem:[%s2] sm:$0xff]
    %v51 = vld [vmem:[%s2 + $0x8] sm:$0xff]
    %v52 = vld [vmem:[%s2 + $0x10] sm:$0xff]
    %v53 = vld [vmem:[%s2 + $0x18] sm:$0xff]
    %v54 = vld [vmem:[%s2 + $0x20] sm:$0xff]
    %v55 = vld [vmem:[%s2 + $0x28] sm:$0xff]
    %v56 = vld [vmem:[%s2 + $0x30] sm:$0xff]
    %v57 = vld [vmem:[%s2 + $0x38] sm:$0xff]
    %v58 = vld [vmem:[%s2 + $0x40] sm:$0xff]
    %v59 = vld [vmem:[%s2 + $0x48] sm:$0xff]
    %v60 = vld [vmem:[%s2 + $0x50] sm:$0xff]
    %v61 = vld [vmem:[%s2 + $0x58] sm:$0xff]
    %v62 = vld [vmem:[%s2 + $0x60] sm:$0xff]
    %v63 = vld [vmem:[%s2 + $0x68] sm:$0xff]
    %v64 = vld [vmem:[%s2 + $0x70] sm:$0xff]
    %v65 = vld [vmem:[%s2 + $0x78] sm:$0xff]
    %v66 = vld [vmem:[#allocation5] sm:$0xf]
    %v67 = vld [vmem:[#allocation5 + $0x4] sm:$0xf]
    %v68 = vld [vmem:[#allocation5 + $0x8] sm:$0xf]
    %v69 = vld [vmem:[#allocation5 + $0xc] sm:$0xf]
    %v70 = vld [vmem:[#allocation5 + $0x10] sm:$0xf]
    %v71 = vld [vmem:[#allocation5 + $0x14] sm:$0xf]
    %v72 = vld [vmem:[#allocation5 + $0x18] sm:$0xf]
    %v73 = vld [vmem:[#allocation5 + $0x1c] sm:$0xf]
    %v74 = vld [vmem:[#allocation5 + $0x20] sm:$0xf]
    %v75 = vld [vmem:[#allocation5 + $0x24] sm:$0xf]
    %v76 = vld [vmem:[#allocation5 + $0x28] sm:$0xf]
    %v77 = vld [vmem:[#allocation5 + $0x2c] sm:$0xf]
    %v78 = vld [vmem:[#allocation5 + $0x30] sm:$0xf]
    %v79 = vld [vmem:[#allocation5 + $0x34] sm:$0xf]
    %v80 = vld [vmem:[#allocation5 + $0x38] sm:$0xf]
    %v81 = vld [vmem:[#allocation5 + $0x3c] sm:$0xf]
    %v82 = vld [vmem:[#allocation5 + $0x40] sm:$0xf]
    %v83 = vld [vmem:[#allocation5 + $0x44] sm:$0xf]
    %v84 = vld [vmem:[#allocation5 + $0x48] sm:$0xf]
    %v85 = vld [vmem:[#allocation5 + $0x4c] sm:$0xf]
    %v86 = vld [vmem:[#allocation5 + $0x50] sm:$0xf]
    %v87 = vld [vmem:[#allocation5 + $0x54] sm:$0xf]
    %v88 = vld [vmem:[#allocation5 + $0x58] sm:$0xf]
    %v89 = vld [vmem:[#allocation5 + $0x5c] sm:$0xf]
    %v90 = vld [vmem:[#allocation5 + $0x60] sm:$0xf]
    %v91 = vld [vmem:[#allocation5 + $0x64] sm:$0xf]
    %v92 = vld [vmem:[#allocation5 + $0x68] sm:$0xf]
    %v93 = vld [vmem:[#allocation5 + $0x6c] sm:$0xf]
    %v94 = vld [vmem:[#allocation5 + $0x70] sm:$0xf]
    %v95 = vld [vmem:[#allocation5 + $0x74] sm:$0xf]
    %v96 = vld [vmem:[#allocation5 + $0x78] sm:$0xf]
    %v97 = vld [vmem:[#allocation5 + $0x7c] sm:$0xf]
    %v114 = vunpack.c.l.b16 %v50
    %v115 = vunpack.c.h.b16 %v50
    %v116 = vunpack.c.l.b16 %v51
    %v117 = vunpack.c.h.b16 %v51
    %v118 = vunpack.c.l.b16 %v52
    %v119 = vunpack.c.h.b16 %v52
    %v120 = vunpack.c.l.b16 %v53
    %v121 = vunpack.c.h.b16 %v53
    %v122 = vunpack.c.l.b16 %v54
    %v123 = vunpack.c.h.b16 %v54
    %v124 = vunpack.c.l.b16 %v55
    %v125 = vunpack.c.h.b16 %v55
    %v126 = vunpack.c.l.b16 %v56
    %v127 = vunpack.c.h.b16 %v56
    %v128 = vunpack.c.l.b16 %v57
    %v129 = vunpack.c.h.b16 %v57
    %v130 = vunpack.c.l.b16 %v58
    %v131 = vunpack.c.h.b16 %v58
    %v132 = vunpack.c.l.b16 %v59
    %v133 = vunpack.c.h.b16 %v59
    %v134 = vunpack.c.l.b16 %v60
    %v135 = vunpack.c.h.b16 %v60
    %v136 = vunpack.c.l.b16 %v61
    %v137 = vunpack.c.h.b16 %v61
    %v138 = vunpack.c.l.b16 %v62
    %v139 = vunpack.c.h.b16 %v62
    %v140 = vunpack.c.l.b16 %v63
    %v141 = vunpack.c.h.b16 %v63
    %v142 = vunpack.c.l.b16 %v64
    %v143 = vunpack.c.h.b16 %v64
    %v144 = vunpack.c.l.b16 %v65
    %v145 = vunpack.c.h.b16 %v65
    %v146 = vpack.c.b16 %v116, %v114
    %v147 = vpack.c.b16 %v117, %v115
    %v148 = vpack.c.b16 %v120, %v118
    %v149 = vpack.c.b16 %v121, %v119
    %v150 = vpack.c.b16 %v124, %v122
    %v151 = vpack.c.b16 %v125, %v123
    %v152 = vpack.c.b16 %v128, %v126
    %v153 = vpack.c.b16 %v129, %v127
    %v154 = vpack.c.b16 %v132, %v130
    %v155 = vpack.c.b16 %v133, %v131
    %v156 = vpack.c.b16 %v136, %v134
    %v157 = vpack.c.b16 %v137, %v135
    %v158 = vpack.c.b16 %v140, %v138
    %v159 = vpack.c.b16 %v141, %v139
    %v160 = vpack.c.b16 %v144, %v142
    %v161 = vpack.c.b16 %v145, %v143
    %v210 = vunpack.c.l.b16 %v66
    %v211 = vunpack.c.l.b16 %v67
    %v212 = vunpack.c.l.b16 %v68
    %v213 = vunpack.c.l.b16 %v69
    %v214 = vunpack.c.l.b16 %v70
    %v215 = vunpack.c.l.b16 %v71
    %v216 = vunpack.c.l.b16 %v72
    %v217 = vunpack.c.l.b16 %v73
    %v218 = vunpack.c.l.b16 %v74
    %v219 = vunpack.c.l.b16 %v75
    %v220 = vunpack.c.l.b16 %v76
    %v221 = vunpack.c.l.b16 %v77
    %v222 = vunpack.c.l.b16 %v78
    %v223 = vunpack.c.l.b16 %v79
    %v224 = vunpack.c.l.b16 %v80
    %v225 = vunpack.c.l.b16 %v81
    %v226 = vunpack.c.l.b16 %v82
    %v227 = vunpack.c.l.b16 %v83
    %v228 = vunpack.c.l.b16 %v84
    %v229 = vunpack.c.l.b16 %v85
    %v230 = vunpack.c.l.b16 %v86
    %v231 = vunpack.c.l.b16 %v87
    %v232 = vunpack.c.l.b16 %v88
    %v233 = vunpack.c.l.b16 %v89
    %v234 = vunpack.c.l.b16 %v90
    %v235 = vunpack.c.l.b16 %v91
    %v236 = vunpack.c.l.b16 %v92
    %v237 = vunpack.c.l.b16 %v93
    %v238 = vunpack.c.l.b16 %v94
    %v239 = vunpack.c.l.b16 %v95
    %v240 = vunpack.c.l.b16 %v96
    %v241 = vunpack.c.l.b16 %v97
    %v242 = vpack.c.b16 %v211, %v210
    %v243 = vpack.c.b16 %v213, %v212
    %v244 = vpack.c.b16 %v215, %v214
    %v245 = vpack.c.b16 %v217, %v216
    %v246 = vpack.c.b16 %v219, %v218
    %v247 = vpack.c.b16 %v221, %v220
    %v248 = vpack.c.b16 %v223, %v222
    %v249 = vpack.c.b16 %v225, %v224
    %v250 = vpack.c.b16 %v227, %v226
    %v251 = vpack.c.b16 %v229, %v228
    %v252 = vpack.c.b16 %v231, %v230
    %v253 = vpack.c.b16 %v233, %v232
    %v254 = vpack.c.b16 %v235, %v234
    %v255 = vpack.c.b16 %v237, %v236
    %v256 = vpack.c.b16 %v239, %v238
    %v257 = vpack.c.b16 %v241, %v240
    %274 = vmatprep.subr.bf16.mxu0 0
    %275 = vmatpush1.bf16.msra.mxu0 %v242
    %276 = vmatprep.subr.bf16.mxu0 0
    %277 = vmatpush1.bf16.msra.mxu0 %v243
    %278 = vmatprep.subr.bf16.mxu0 0
    %279 = vmatpush1.bf16.msra.mxu0 %v244
    %280 = vmatprep.subr.bf16.mxu0 0
    %281 = vmatpush1.bf16.msra.mxu0 %v245
    %282 = vmatprep.subr.bf16.mxu0 0
    %283 = vmatpush1.bf16.msra.mxu0 %v246
    %284 = vmatprep.subr.bf16.mxu0 0
    %285 = vmatpush1.bf16.msra.mxu0 %v247
    %286 = vmatprep.subr.bf16.mxu0 0
    %287 = vmatpush1.bf16.msra.mxu0 %v248
    %288 = vmatprep.subr.bf16.mxu0 0
    %289 = vmatpush1.bf16.msra.mxu0 %v249
    %290 = vmatprep.subr.bf16.mxu0 0
    %291 = vmatpush1.bf16.msra.mxu0 %v250
    %292 = vmatprep.subr.bf16.mxu0 0
    %293 = vmatpush1.bf16.msra.mxu0 %v251
    %294 = vmatprep.subr.bf16.mxu0 0
    %295 = vmatpush1.bf16.msra.mxu0 %v252
    %296 = vmatprep.subr.bf16.mxu0 0
    %297 = vmatpush1.bf16.msra.mxu0 %v253
    %298 = vmatprep.subr.bf16.mxu0 0
    %299 = vmatpush1.bf16.msra.mxu0 %v254
    %300 = vmatprep.subr.bf16.mxu0 0
    %301 = vmatpush1.bf16.msra.mxu0 %v255
    %302 = vmatprep.subr.bf16.mxu0 0
    %303 = vmatpush1.bf16.msra.mxu0 %v256
    %304 = vmatprep.subr.bf16.mxu0 0
    %305 = vmatpush1.bf16.msra.mxu0 %v257
    %306 = vmatprep.mubr.bf16.mxu0 %v147
    %307 = vmatmul.mubr.bf16.gmra.mrb[0].mxu0 %v146
    %v308 = vpop.f32.mrb[0].mxu0
    %v309 = vadd.f32 0.0, %v308
    %v310 = vpop.f32.mrb[0].mxu0
    %v311 = vpop.f32.mrb[0].mxu0
    %v312 = vadd.f32 0.0, %v311
    %v313 = vpop.f32.mrb[0].mxu0
    %314 = vmatprep.mubr.bf16.mxu0 %v149
    %315 = vmatmul.mubr.bf16.gmra.mrb[0].mxu0 %v148
    %v316 = vpop.f32.mrb[0].mxu0
    %v317 = vadd.f32 0.0, %v316
    %v318 = vpop.f32.mrb[0].mxu0
    %v319 = vpop.f32.mrb[0].mxu0
    %v320 = vadd.f32 0.0, %v319
    %v321 = vpop.f32.mrb[0].mxu0
    %322 = vmatprep.mubr.bf16.mxu0 %v151
    %323 = vmatmul.mubr.bf16.gmra.mrb[0].mxu0 %v150
    %v324 = vpop.f32.mrb[0].mxu0
    %v325 = vadd.f32 0.0, %v324
    %v326 = vpop.f32.mrb[0].mxu0
    %v327 = vpop.f32.mrb[0].mxu0
    %v328 = vadd.f32 0.0, %v327
    %v329 = vpop.f32.mrb[0].mxu0
    %330 = vmatprep.mubr.bf16.mxu0 %v153
    %331 = vmatmul.mubr.bf16.gmra.mrb[0].mxu0 %v152
    %v332 = vpop.f32.mrb[0].mxu0
    %v333 = vadd.f32 0.0, %v332
    %v334 = vpop.f32.mrb[0].mxu0
    %v335 = vpop.f32.mrb[0].mxu0
    %v336 = vadd.f32 0.0, %v335
    %v337 = vpop.f32.mrb[0].mxu0
    %338 = vmatprep.mubr.bf16.mxu0 %v155
    %339 = vmatmul.mubr.bf16.gmra.mrb[0].mxu0 %v154
    %v340 = vpop.f32.mrb[0].mxu0
    %v341 = vadd.f32 0.0, %v340
    %v342 = vpop.f32.mrb[0].mxu0
    %v343 = vpop.f32.mrb[0].mxu0
    %v344 = vadd.f32 0.0, %v343
    %v345 = vpop.f32.mrb[0].mxu0
    %346 = vmatprep.mubr.bf16.mxu0 %v157
    %347 = vmatmul.mubr.bf16.gmra.mrb[0].mxu0 %v156
    %v348 = vpop.f32.mrb[0].mxu0
    %v349 = vadd.f32 0.0, %v348
    %v350 = vpop.f32.mrb[0].mxu0
    %v351 = vpop.f32.mrb[0].mxu0
    %v352 = vadd.f32 0.0, %v351
    %v353 = vpop.f32.mrb[0].mxu0
    %354 = vmatprep.mubr.bf16.mxu0 %v159
    %355 = vmatmul.mubr.bf16.gmra.mrb[0].mxu0 %v158
    %v356 = vpop.f32.mrb[0].mxu0
    %v357 = vadd.f32 0.0, %v356
    %v358 = vpop.f32.mrb[0].mxu0
    %v359 = vpop.f32.mrb[0].mxu0
    %v360 = vadd.f32 0.0, %v359
    %v361 = vpop.f32.mrb[0].mxu0
    %362 = vmatprep.mubr.bf16.mxu0 %v161
    %363 = vmatmul.mubr.bf16.gmra.mrb[0].mxu0 %v160
    %v364 = vpop.f32.mrb[0].mxu0
    %v365 = vadd.f32 0.0, %v364
    %v366 = vpop.f32.mrb[0].mxu0
    %v367 = vpop.f32.mrb[0].mxu0
    %v368 = vadd.f32 0.0, %v367
    %v369 = vpop.f32.mrb[0].mxu0
    %370 = vdwg.mxu0
    %v371 = vld [vmem:[%s0] sm:$0xff]
    %v372 = vld [vmem:[%s0 + $0x8] sm:$0xff]
    %v373 = vld [vmem:[%s0 + $0x10] sm:$0xff]
    %v374 = vld [vmem:[%s0 + $0x18] sm:$0xff]
    %v375 = vld [vmem:[%s0 + $0x20] sm:$0xff]
    %v376 = vld [vmem:[%s0 + $0x28] sm:$0xff]
    %v377 = vld [vmem:[%s0 + $0x30] sm:$0xff]
    %v378 = vld [vmem:[%s0 + $0x38] sm:$0xff]
    %v379 = vld [vmem:[%s0 + $0x40] sm:$0xff]
    %v380 = vld [vmem:[%s0 + $0x48] sm:$0xff]
    %v381 = vld [vmem:[%s0 + $0x50] sm:$0xff]
    %v382 = vld [vmem:[%s0 + $0x58] sm:$0xff]
    %v383 = vld [vmem:[%s0 + $0x60] sm:$0xff]
    %v384 = vld [vmem:[%s0 + $0x68] sm:$0xff]
    %v385 = vld [vmem:[%s0 + $0x70] sm:$0xff]
    %v386 = vld [vmem:[%s0 + $0x78] sm:$0xff]
    %388 = vset.pattern.permute.xlu0 0
    %389 = vperm.xlu0 %388, %v371
    %v390 = vpop.permute.xlu0 %389
    %393 = vset.pattern.permute.xlu0 0
    %394 = vperm.xlu0 %393, %v372
    %v395 = vpop.permute.xlu0 %394
    %398 = vset.pattern.permute.xlu0 0
    %399 = vperm.xlu0 %398, %v373
    %v400 = vpop.permute.xlu0 %399
    %403 = vset.pattern.permute.xlu0 0
    %404 = vperm.xlu0 %403, %v374
    %v405 = vpop.permute.xlu0 %404
    %408 = vset.pattern.permute.xlu0 0
    %409 = vperm.xlu0 %408, %v375
    %v410 = vpop.permute.xlu0 %409
    %413 = vset.pattern.permute.xlu0 0
    %414 = vperm.xlu0 %413, %v376
    %v415 = vpop.permute.xlu0 %414
    %418 = vset.pattern.permute.xlu0 0
    %419 = vperm.xlu0 %418, %v377
    %v420 = vpop.permute.xlu0 %419
    %423 = vset.pattern.permute.xlu0 0
    %424 = vperm.xlu0 %423, %v378
    %v425 = vpop.permute.xlu0 %424
    %428 = vset.pattern.permute.xlu0 0
    %429 = vperm.xlu0 %428, %v379
    %v430 = vpop.permute.xlu0 %429
    %433 = vset.pattern.permute.xlu0 0
    %434 = vperm.xlu0 %433, %v380
    %v435 = vpop.permute.xlu0 %434
    %438 = vset.pattern.permute.xlu0 0
    %439 = vperm.xlu0 %438, %v381
    %v440 = vpop.permute.xlu0 %439
    %443 = vset.pattern.permute.xlu0 0
    %444 = vperm.xlu0 %443, %v382
    %v445 = vpop.permute.xlu0 %444
    %448 = vset.pattern.permute.xlu0 0
    %449 = vperm.xlu0 %448, %v383
    %v450 = vpop.permute.xlu0 %449
    %453 = vset.pattern.permute.xlu0 0
    %454 = vperm.xlu0 %453, %v384
    %v455 = vpop.permute.xlu0 %454
    %458 = vset.pattern.permute.xlu0 0
    %459 = vperm.xlu0 %458, %v385
    %v460 = vpop.permute.xlu0 %459
    %463 = vset.pattern.permute.xlu0 0
    %464 = vperm.xlu0 %463, %v386
    %v465 = vpop.permute.xlu0 %464
    %v467 = vmul.f32 %v390, %v309
    %v468 = vmul.f32 %v395, %v312
    %v469 = vmul.f32 %v400, %v317
    %v470 = vmul.f32 %v405, %v320
    %v471 = vmul.f32 %v410, %v325
    %v472 = vmul.f32 %v415, %v328
    %v473 = vmul.f32 %v420, %v333
    %v474 = vmul.f32 %v425, %v336
    %v475 = vmul.f32 %v430, %v341
    %v476 = vmul.f32 %v435, %v344
    %v477 = vmul.f32 %v440, %v349
    %v478 = vmul.f32 %v445, %v352
    %v479 = vmul.f32 %v450, %v357
    %v480 = vmul.f32 %v455, %v360
    %v481 = vmul.f32 %v460, %v365
    %v482 = vmul.f32 %v465, %v368
    %v483 = vpack.c.bf16 %v468, %v467
    %v484 = vpack.c.bf16 %v470, %v469
    %v485 = vpack.c.bf16 %v472, %v471
    %v486 = vpack.c.bf16 %v474, %v473
    %v487 = vpack.c.bf16 %v476, %v475
    %v488 = vpack.c.bf16 %v478, %v477
    %v489 = vpack.c.bf16 %v480, %v479
    %v490 = vpack.c.bf16 %v482, %v481
    %v491 = vld [vmem:[#allocation2] sm:$0xf]
    %v492 = vld [vmem:[#allocation2 + $0x4] sm:$0xf]
    %v493 = vld [vmem:[#allocation2 + $0x8] sm:$0xf]
    %v494 = vld [vmem:[#allocation2 + $0xc] sm:$0xf]
    %v495 = vld [vmem:[#allocation2 + $0x10] sm:$0xf]
    %v496 = vld [vmem:[#allocation2 + $0x14] sm:$0xf]
    %v497 = vld [vmem:[#allocation2 + $0x18] sm:$0xf]
    %v498 = vld [vmem:[#allocation2 + $0x1c] sm:$0xf]
    %v499 = vld [vmem:[#allocation2 + $0x20] sm:$0xf]
    %v500 = vld [vmem:[#allocation2 + $0x24] sm:$0xf]
    %v501 = vld [vmem:[#allocation2 + $0x28] sm:$0xf]
    %v502 = vld [vmem:[#allocation2 + $0x2c] sm:$0xf]
    %v503 = vld [vmem:[#allocation2 + $0x30] sm:$0xf]
    %v504 = vld [vmem:[#allocation2 + $0x34] sm:$0xf]
    %v505 = vld [vmem:[#allocation2 + $0x38] sm:$0xf]
    %v506 = vld [vmem:[#allocation2 + $0x3c] sm:$0xf]
    %v509 = vunpack.c.l.b16 %v491
    %v510 = vunpack.c.l.b16 %v492
    %v511 = vpack.c.b16 %v510, %v509
    %vm512 = vcmask 130048
    %v514 = vsel %vm512, %v511, 0
    %516 = vmatprep.subr.bf16.mxu0 0
    %517 = vmatpush1.bf16.msra.mxu0 %v483
    %518 = vmatprep.subr.bf16.mxu0 0
    %519 = vmatpush1.bf16.msra.mxu0 0
    %520 = vmatprep.subr.bf16.mxu0 0
    %521 = vmatpush1.bf16.msra.mxu0 0
    %522 = vmatprep.subr.bf16.mxu0 0
    %523 = vmatpush1.bf16.msra.mxu0 0
    %524 = vmatprep.subr.bf16.mxu0 0
    %525 = vmatpush1.bf16.msra.mxu0 0
    %526 = vmatprep.subr.bf16.mxu0 0
    %527 = vmatpush1.bf16.msra.mxu0 0
    %528 = vmatprep.subr.bf16.mxu0 0
    %529 = vmatpush1.bf16.msra.mxu0 0
    %530 = vmatprep.subr.bf16.mxu0 0
    %531 = vmatpush1.bf16.msra.mxu0 0
    %532 = vmatprep.subr.bf16.mxu0 0
    %533 = vmatpush1.bf16.msra.mxu0 0
    %534 = vmatprep.subr.bf16.mxu0 0
    %535 = vmatpush1.bf16.msra.mxu0 0
    %536 = vmatprep.subr.bf16.mxu0 0
    %537 = vmatpush1.bf16.msra.mxu0 0
    %538 = vmatprep.subr.bf16.mxu0 0
    %539 = vmatpush1.bf16.msra.mxu0 0
    %540 = vmatprep.subr.bf16.mxu0 0
    %541 = vmatpush1.bf16.msra.mxu0 0
    %542 = vmatprep.subr.bf16.mxu0 0
    %543 = vmatpush1.bf16.msra.mxu0 0
    %544 = vmatprep.subr.bf16.mxu0 0
    %545 = vmatpush1.bf16.msra.mxu0 0
    %546 = vmatprep.subr.bf16.mxu0 0
    %547 = vmatpush1.bf16.msra.mxu0 0
    %548 = vmatprep.mubr.bf16.mxu0 0
    %549 = vmatmul.mubr.bf16.gmra.mrb[0].mxu0 %v514
    %v550 = vpop.f32.mrb[0].mxu0
    %v551 = vadd.f32 0.0, %v550
    %v552 = vpop.f32.mrb[0].mxu0
    %v553 = vpop.f32.mrb[0].mxu0
    %v554 = vadd.f32 0.0, %v553
    %v555 = vpop.f32.mrb[0].mxu0
    %556 = vdwg.mxu0
    %v559 = vunpack.c.l.b16 %v493
    %v560 = vunpack.c.l.b16 %v494
    %v561 = vpack.c.b16 %v560, %v559
    %v563 = vsel %vm512, %v561, 0
    %565 = vmatprep.subr.bf16.mxu0 0
    %566 = vmatpush1.bf16.msra.mxu0 %v484
    %567 = vmatprep.subr.bf16.mxu0 0
    %568 = vmatpush1.bf16.msra.mxu0 0
    %569 = vmatprep.subr.bf16.mxu0 0
    %570 = vmatpush1.bf16.msra.mxu0 0
    %571 = vmatprep.subr.bf16.mxu0 0
    %572 = vmatpush1.bf16.msra.mxu0 0
    %573 = vmatprep.subr.bf16.mxu0 0
    %574 = vmatpush1.bf16.msra.mxu0 0
    %575 = vmatprep.subr.bf16.mxu0 0
    %576 = vmatpush1.bf16.msra.mxu0 0
    %577 = vmatprep.subr.bf16.mxu0 0
    %578 = vmatpush1.bf16.msra.mxu0 0
    %579 = vmatprep.subr.bf16.mxu0 0
    %580 = vmatpush1.bf16.msra.mxu0 0
    %581 = vmatprep.subr.bf16.mxu0 0
    %582 = vmatpush1.bf16.msra.mxu0 0
    %583 = vmatprep.subr.bf16.mxu0 0
    %584 = vmatpush1.bf16.msra.mxu0 0
    %585 = vmatprep.subr.bf16.mxu0 0
    %586 = vmatpush1.bf16.msra.mxu0 0
    %587 = vmatprep.subr.bf16.mxu0 0
    %588 = vmatpush1.bf16.msra.mxu0 0
    %589 = vmatprep.subr.bf16.mxu0 0
    %590 = vmatpush1.bf16.msra.mxu0 0
    %591 = vmatprep.subr.bf16.mxu0 0
    %592 = vmatpush1.bf16.msra.mxu0 0
    %593 = vmatprep.subr.bf16.mxu0 0
    %594 = vmatpush1.bf16.msra.mxu0 0
    %595 = vmatprep.subr.bf16.mxu0 0
    %596 = vmatpush1.bf16.msra.mxu0 0
    %597 = vmatprep.mubr.bf16.mxu0 0
    %598 = vmatmul.mubr.bf16.gmra.mrb[0].mxu0 %v563
    %v599 = vpop.f32.mrb[0].mxu0
    %v600 = vadd.f32 0.0, %v599
    %v601 = vpop.f32.mrb[0].mxu0
    %v602 = vpop.f32.mrb[0].mxu0
    %v603 = vadd.f32 0.0, %v602
    %v604 = vpop.f32.mrb[0].mxu0
    %605 = vdwg.mxu0
    %v608 = vunpack.c.l.b16 %v495
    %v609 = vunpack.c.l.b16 %v496
    %v610 = vpack.c.b16 %v609, %v608
    %v612 = vsel %vm512, %v610, 0
    %614 = vmatprep.subr.bf16.mxu0 0
    %615 = vmatpush1.bf16.msra.mxu0 %v485
    %616 = vmatprep.subr.bf16.mxu0 0
    %617 = vmatpush1.bf16.msra.mxu0 0
    %618 = vmatprep.subr.bf16.mxu0 0
    %619 = vmatpush1.bf16.msra.mxu0 0
    %620 = vmatprep.subr.bf16.mxu0 0
    %621 = vmatpush1.bf16.msra.mxu0 0
    %622 = vmatprep.subr.bf16.mxu0 0
    %623 = vmatpush1.bf16.msra.mxu0 0
    %624 = vmatprep.subr.bf16.mxu0 0
    %625 = vmatpush1.bf16.msra.mxu0 0
    %626 = vmatprep.subr.bf16.mxu0 0
    %627 = vmatpush1.bf16.msra.mxu0 0
    %628 = vmatprep.subr.bf16.mxu0 0
    %629 = vmatpush1.bf16.msra.mxu0 0
    %630 = vmatprep.subr.bf16.mxu0 0
    %631 = vmatpush1.bf16.msra.mxu0 0
    %632 = vmatprep.subr.bf16.mxu0 0
    %633 = vmatpush1.bf16.msra.mxu0 0
    %634 = vmatprep.subr.bf16.mxu0 0
    %635 = vmatpush1.bf16.msra.mxu0 0
    %636 = vmatprep.subr.bf16.mxu0 0
    %637 = vmatpush1.bf16.msra.mxu0 0
    %638 = vmatprep.subr.bf16.mxu0 0
    %639 = vmatpush1.bf16.msra.mxu0 0
    %640 = vmatprep.subr.bf16.mxu0 0
    %641 = vmatpush1.bf16.msra.mxu0 0
    %642 = vmatprep.subr.bf16.mxu0 0
    %643 = vmatpush1.bf16.msra.mxu0 0
    %644 = vmatprep.subr.bf16.mxu0 0
    %645 = vmatpush1.bf16.msra.mxu0 0
    %646 = vmatprep.mubr.bf16.mxu0 0
    %647 = vmatmul.mubr.bf16.gmra.mrb[0].mxu0 %v612
    %v648 = vpop.f32.mrb[0].mxu0
    %v649 = vadd.f32 0.0, %v648
    %v650 = vpop.f32.mrb[0].mxu0
    %v651 = vpop.f32.mrb[0].mxu0
    %v652 = vadd.f32 0.0, %v651
    %v653 = vpop.f32.mrb[0].mxu0
    %654 = vdwg.mxu0
    %v657 = vunpack.c.l.b16 %v497
    %v658 = vunpack.c.l.b16 %v498
    %v659 = vpack.c.b16 %v658, %v657
    %v661 = vsel %vm512, %v659, 0
    %663 = vmatprep.subr.bf16.mxu0 0
    %664 = vmatpush1.bf16.msra.mxu0 %v486
    %665 = vmatprep.subr.bf16.mxu0 0
    %666 = vmatpush1.bf16.msra.mxu0 0
    %667 = vmatprep.subr.bf16.mxu0 0
    %668 = vmatpush1.bf16.msra.mxu0 0
    %669 = vmatprep.subr.bf16.mxu0 0
    %670 = vmatpush1.bf16.msra.mxu0 0
    %671 = vmatprep.subr.bf16.mxu0 0
    %672 = vmatpush1.bf16.msra.mxu0 0
    %673 = vmatprep.subr.bf16.mxu0 0
    %674 = vmatpush1.bf16.msra.mxu0 0
    %675 = vmatprep.subr.bf16.mxu0 0
    %676 = vmatpush1.bf16.msra.mxu0 0
    %677 = vmatprep.subr.bf16.mxu0 0
    %678 = vmatpush1.bf16.msra.mxu0 0
    %679 = vmatprep.subr.bf16.mxu0 0
    %680 = vmatpush1.bf16.msra.mxu0 0
    %681 = vmatprep.subr.bf16.mxu0 0
    %682 = vmatpush1.bf16.msra.mxu0 0
    %683 = vmatprep.subr.bf16.mxu0 0
    %684 = vmatpush1.bf16.msra.mxu0 0
    %685 = vmatprep.subr.bf16.mxu0 0
    %686 = vmatpush1.bf16.msra.mxu0 0
    %687 = vmatprep.subr.bf16.mxu0 0
    %688 = vmatpush1.bf16.msra.mxu0 0
    %689 = vmatprep.subr.bf16.mxu0 0
    %690 = vmatpush1.bf16.msra.mxu0 0
    %691 = vmatprep.subr.bf16.mxu0 0
    %692 = vmatpush1.bf16.msra.mxu0 0
    %693 = vmatprep.subr.bf16.mxu0 0
    %694 = vmatpush1.bf16.msra.mxu0 0
    %695 = vmatprep.mubr.bf16.mxu0 0
    %696 = vmatmul.mubr.bf16.gmra.mrb[0].mxu0 %v661
    %v697 = vpop.f32.mrb[0].mxu0
    %v698 = vadd.f32 0.0, %v697
    %v699 = vpop.f32.mrb[0].mxu0
    %v700 = vpop.f32.mrb[0].mxu0
    %v701 = vadd.f32 0.0, %v700
    %v702 = vpop.f32.mrb[0].mxu0
    %703 = vdwg.mxu0
    %v706 = vunpack.c.l.b16 %v499
    %v707 = vunpack.c.l.b16 %v500
    %v708 = vpack.c.b16 %v707, %v706
    %v710 = vsel %vm512, %v708, 0
    %712 = vmatprep.subr.bf16.mxu0 0
    %713 = vmatpush1.bf16.msra.mxu0 %v487
    %714 = vmatprep.subr.bf16.mxu0 0
    %715 = vmatpush1.bf16.msra.mxu0 0
    %716 = vmatprep.subr.bf16.mxu0 0
    %717 = vmatpush1.bf16.msra.mxu0 0
    %718 = vmatprep.subr.bf16.mxu0 0
    %719 = vmatpush1.bf16.msra.mxu0 0
    %720 = vmatprep.subr.bf16.mxu0 0
    %721 = vmatpush1.bf16.msra.mxu0 0
    %722 = vmatprep.subr.bf16.mxu0 0
    %723 = vmatpush1.bf16.msra.mxu0 0
    %724 = vmatprep.subr.bf16.mxu0 0
    %725 = vmatpush1.bf16.msra.mxu0 0
    %726 = vmatprep.subr.bf16.mxu0 0
    %727 = vmatpush1.bf16.msra.mxu0 0
    %728 = vmatprep.subr.bf16.mxu0 0
    %729 = vmatpush1.bf16.msra.mxu0 0
    %730 = vmatprep.subr.bf16.mxu0 0
    %731 = vmatpush1.bf16.msra.mxu0 0
    %732 = vmatprep.subr.bf16.mxu0 0
    %733 = vmatpush1.bf16.msra.mxu0 0
    %734 = vmatprep.subr.bf16.mxu0 0
    %735 = vmatpush1.bf16.msra.mxu0 0
    %736 = vmatprep.subr.bf16.mxu0 0
    %737 = vmatpush1.bf16.msra.mxu0 0
    %738 = vmatprep.subr.bf16.mxu0 0
    %739 = vmatpush1.bf16.msra.mxu0 0
    %740 = vmatprep.subr.bf16.mxu0 0
    %741 = vmatpush1.bf16.msra.mxu0 0
    %742 = vmatprep.subr.bf16.mxu0 0
    %743 = vmatpush1.bf16.msra.mxu0 0
    %744 = vmatprep.mubr.bf16.mxu0 0
    %745 = vmatmul.mubr.bf16.gmra.mrb[0].mxu0 %v710
    %v746 = vpop.f32.mrb[0].mxu0
    %v747 = vadd.f32 0.0, %v746
    %v748 = vpop.f32.mrb[0].mxu0
    %v749 = vpop.f32.mrb[0].mxu0
    %v750 = vadd.f32 0.0, %v749
    %v751 = vpop.f32.mrb[0].mxu0
    %752 = vdwg.mxu0
    %v755 = vunpack.c.l.b16 %v501
    %v756 = vunpack.c.l.b16 %v502
    %v757 = vpack.c.b16 %v756, %v755
    %v759 = vsel %vm512, %v757, 0
    %761 = vmatprep.subr.bf16.mxu0 0
    %762 = vmatpush1.bf16.msra.mxu0 %v488
    %763 = vmatprep.subr.bf16.mxu0 0
    %764 = vmatpush1.bf16.msra.mxu0 0
    %765 = vmatprep.subr.bf16.mxu0 0
    %766 = vmatpush1.bf16.msra.mxu0 0
    %767 = vmatprep.subr.bf16.mxu0 0
    %768 = vmatpush1.bf16.msra.mxu0 0
    %769 = vmatprep.subr.bf16.mxu0 0
    %770 = vmatpush1.bf16.msra.mxu0 0
    %771 = vmatprep.subr.bf16.mxu0 0
    %772 = vmatpush1.bf16.msra.mxu0 0
    %773 = vmatprep.subr.bf16.mxu0 0
    %774 = vmatpush1.bf16.msra.mxu0 0
    %775 = vmatprep.subr.bf16.mxu0 0
    %776 = vmatpush1.bf16.msra.mxu0 0
    %777 = vmatprep.subr.bf16.mxu0 0
    %778 = vmatpush1.bf16.msra.mxu0 0
    %779 = vmatprep.subr.bf16.mxu0 0
    %780 = vmatpush1.bf16.msra.mxu0 0
    %781 = vmatprep.subr.bf16.mxu0 0
    %782 = vmatpush1.bf16.msra.mxu0 0
    %783 = vmatprep.subr.bf16.mxu0 0
    %784 = vmatpush1.bf16.msra.mxu0 0
    %785 = vmatprep.subr.bf16.mxu0 0
    %786 = vmatpush1.bf16.msra.mxu0 0
    %787 = vmatprep.subr.bf16.mxu0 0
    %788 = vmatpush1.bf16.msra.mxu0 0
    %789 = vmatprep.subr.bf16.mxu0 0
    %790 = vmatpush1.bf16.msra.mxu0 0
    %791 = vmatprep.subr.bf16.mxu0 0
    %792 = vmatpush1.bf16.msra.mxu0 0
    %793 = vmatprep.mubr.bf16.mxu0 0
    %794 = vmatmul.mubr.bf16.gmra.mrb[0].mxu0 %v759
    %v795 = vpop.f32.mrb[0].mxu0
    %v796 = vadd.f32 0.0, %v795
    %v797 = vpop.f32.mrb[0].mxu0
    %v798 = vpop.f32.mrb[0].mxu0
    %v799 = vadd.f32 0.0, %v798
    %v800 = vpop.f32.mrb[0].mxu0
    %801 = vdwg.mxu0
    %v804 = vunpack.c.l.b16 %v503
    %v805 = vunpack.c.l.b16 %v504
    %v806 = vpack.c.b16 %v805, %v804
    %v808 = vsel %vm512, %v806, 0
    %810 = vmatprep.subr.bf16.mxu0 0
    %811 = vmatpush1.bf16.msra.mxu0 %v489
    %812 = vmatprep.subr.bf16.mxu0 0
    %813 = vmatpush1.bf16.msra.mxu0 0
    %814 = vmatprep.subr.bf16.mxu0 0
    %815 = vmatpush1.bf16.msra.mxu0 0
    %816 = vmatprep.subr.bf16.mxu0 0
    %817 = vmatpush1.bf16.msra.mxu0 0
    %818 = vmatprep.subr.bf16.mxu0 0
    %819 = vmatpush1.bf16.msra.mxu0 0
    %820 = vmatprep.subr.bf16.mxu0 0
    %821 = vmatpush1.bf16.msra.mxu0 0
    %822 = vmatprep.subr.bf16.mxu0 0
    %823 = vmatpush1.bf16.msra.mxu0 0
    %824 = vmatprep.subr.bf16.mxu0 0
    %825 = vmatpush1.bf16.msra.mxu0 0
    %826 = vmatprep.subr.bf16.mxu0 0
    %827 = vmatpush1.bf16.msra.mxu0 0
    %828 = vmatprep.subr.bf16.mxu0 0
    %829 = vmatpush1.bf16.msra.mxu0 0
    %830 = vmatprep.subr.bf16.mxu0 0
    %831 = vmatpush1.bf16.msra.mxu0 0
    %832 = vmatprep.subr.bf16.mxu0 0
    %833 = vmatpush1.bf16.msra.mxu0 0
    %834 = vmatprep.subr.bf16.mxu0 0
    %835 = vmatpush1.bf16.msra.mxu0 0
    %836 = vmatprep.subr.bf16.mxu0 0
    %837 = vmatpush1.bf16.msra.mxu0 0
    %838 = vmatprep.subr.bf16.mxu0 0
    %839 = vmatpush1.bf16.msra.mxu0 0
    %840 = vmatprep.subr.bf16.mxu0 0
    %841 = vmatpush1.bf16.msra.mxu0 0
    %842 = vmatprep.mubr.bf16.mxu0 0
    %843 = vmatmul.mubr.bf16.gmra.mrb[0].mxu0 %v808
    %v844 = vpop.f32.mrb[0].mxu0
    %v845 = vadd.f32 0.0, %v844
    %v846 = vpop.f32.mrb[0].mxu0
    %v847 = vpop.f32.mrb[0].mxu0
    %v848 = vadd.f32 0.0, %v847
    %v849 = vpop.f32.mrb[0].mxu0
    %850 = vdwg.mxu0
    %v853 = vunpack.c.l.b16 %v505
    %v854 = vunpack.c.l.b16 %v506
    %v855 = vpack.c.b16 %v854, %v853
    %v857 = vsel %vm512, %v855, 0
    %859 = vmatprep.subr.bf16.mxu0 0
    %860 = vmatpush1.bf16.msra.mxu0 %v490
    %861 = vmatprep.subr.bf16.mxu0 0
    %862 = vmatpush1.bf16.msra.mxu0 0
    %863 = vmatprep.subr.bf16.mxu0 0
    %864 = vmatpush1.bf16.msra.mxu0 0
    %865 = vmatprep.subr.bf16.mxu0 0
    %866 = vmatpush1.bf16.msra.mxu0 0
    %867 = vmatprep.subr.bf16.mxu0 0
    %868 = vmatpush1.bf16.msra.mxu0 0
    %869 = vmatprep.subr.bf16.mxu0 0
    %870 = vmatpush1.bf16.msra.mxu0 0
    %871 = vmatprep.subr.bf16.mxu0 0
    %872 = vmatpush1.bf16.msra.mxu0 0
    %873 = vmatprep.subr.bf16.mxu0 0
    %874 = vmatpush1.bf16.msra.mxu0 0
    %875 = vmatprep.subr.bf16.mxu0 0
    %876 = vmatpush1.bf16.msra.mxu0 0
    %877 = vmatprep.subr.bf16.mxu0 0
    %878 = vmatpush1.bf16.msra.mxu0 0
    %879 = vmatprep.subr.bf16.mxu0 0
    %880 = vmatpush1.bf16.msra.mxu0 0
    %881 = vmatprep.subr.bf16.mxu0 0
    %882 = vmatpush1.bf16.msra.mxu0 0
    %883 = vmatprep.subr.bf16.mxu0 0
    %884 = vmatpush1.bf16.msra.mxu0 0
    %885 = vmatprep.subr.bf16.mxu0 0
    %886 = vmatpush1.bf16.msra.mxu0 0
    %887 = vmatprep.subr.bf16.mxu0 0
    %888 = vmatpush1.bf16.msra.mxu0 0
    %889 = vmatprep.subr.bf16.mxu0 0
    %890 = vmatpush1.bf16.msra.mxu0 0
    %891 = vmatprep.mubr.bf16.mxu0 0
    %892 = vmatmul.mubr.bf16.gmra.mrb[0].mxu0 %v857
    %v893 = vpop.f32.mrb[0].mxu0
    %v894 = vadd.f32 0.0, %v893
    %v895 = vpop.f32.mrb[0].mxu0
    %v896 = vpop.f32.mrb[0].mxu0
    %v897 = vadd.f32 0.0, %v896
    %v898 = vpop.f32.mrb[0].mxu0
    %899 = vdwg.mxu0
    %v900 = vmul.f32 %v390, %v551
    %v901 = vmul.f32 %v395, %v554
    %v902 = vmul.f32 %v400, %v600
    %v903 = vmul.f32 %v405, %v603
    %v904 = vmul.f32 %v410, %v649
    %v905 = vmul.f32 %v415, %v652
    %v906 = vmul.f32 %v420, %v698
    %v907 = vmul.f32 %v425, %v701
    %v908 = vmul.f32 %v430, %v747
    %v909 = vmul.f32 %v435, %v750
    %v910 = vmul.f32 %v440, %v796
    %v911 = vmul.f32 %v445, %v799
    %v912 = vmul.f32 %v450, %v845
    %v913 = vmul.f32 %v455, %v848
    %v914 = vmul.f32 %v460, %v894
    %v915 = vmul.f32 %v465, %v897
    %v916 = vld [vmem:[%s4] sm:$0x1]
    %v918 = vlaneseq
    %v919 = vshrl.u32 %v918, 7
    %v920 = vsub.s32 0, %v919
    %v921 = vrot.slane %v916, %v920
    %v923 = vadd.f32 %v900, %v921
    %v924 = vadd.f32 %v901, %v921
    %v925 = vadd.f32 %v902, %v921
    %v926 = vadd.f32 %v903, %v921
    %v927 = vadd.f32 %v904, %v921
    %v928 = vadd.f32 %v905, %v921
    %v929 = vadd.f32 %v906, %v921
    %v930 = vadd.f32 %v907, %v921
    %v931 = vadd.f32 %v908, %v921
    %v932 = vadd.f32 %v909, %v921
    %v933 = vadd.f32 %v910, %v921
    %v934 = vadd.f32 %v911, %v921
    %v935 = vadd.f32 %v912, %v921
    %v936 = vadd.f32 %v913, %v921
    %v937 = vadd.f32 %v914, %v921
    %v938 = vadd.f32 %v915, %v921
    %939 = vst [vmem:[#allocation7] sm:$0xff] %v923
    %940 = vst [vmem:[#allocation7 + $0x8] sm:$0xff] %v924
    %941 = vst [vmem:[#allocation7 + $0x10] sm:$0xff] %v925
    %942 = vst [vmem:[#allocation7 + $0x18] sm:$0xff] %v926
    %943 = vst [vmem:[#allocation7 + $0x20] sm:$0xff] %v927
    %944 = vst [vmem:[#allocation7 + $0x28] sm:$0xff] %v928
    %945 = vst [vmem:[#allocation7 + $0x30] sm:$0xff] %v929
    %946 = vst [vmem:[#allocation7 + $0x38] sm:$0xff] %v930
    %947 = vst [vmem:[#allocation7 + $0x40] sm:$0xff] %v931
    %948 = vst [vmem:[#allocation7 + $0x48] sm:$0xff] %v932
    %949 = vst [vmem:[#allocation7 + $0x50] sm:$0xff] %v933
    %950 = vst [vmem:[#allocation7 + $0x58] sm:$0xff] %v934
    %951 = vst [vmem:[#allocation7 + $0x60] sm:$0xff] %v935
    %952 = vst [vmem:[#allocation7 + $0x68] sm:$0xff] %v936
    %953 = vst [vmem:[#allocation7 + $0x70] sm:$0xff] %v937
    %954 = vst [vmem:[#allocation7 + $0x78] sm:$0xff] %v938
    // Predicated region
    $region30: #{tpu_custom_call.1} parent=1 // pred_check
      _
    $region31: #{tpu_custom_call.1} parent=1 // pred_check_branch
      %956 = sbr.rel (0) target = $region33
    $region32: #{tpu_custom_call.1} parent=1 // pred_region
      %s958 = ssub.s32 2048, 2048
      %959 = vsyncadd [#allocation4], %s958
      %s960 = sshll.u32 [#allocation7], 4
      %s961 = int_to_ptr.vmem [resolvable:$true] %s960
      %966 = dma.vmem_to_hbm [thread:$0]  %s961, 2048, %s5, [#allocation4], 128, 128, 8
    $region33: #{tpu_custom_call.1} parent=1 // pred_fallthru
      _
    // Predicated region
    $region34: #{tpu_custom_call.1} parent=1 // pred_check
      _
    $region35: #{tpu_custom_call.1} parent=1 // pred_check_branch
      %968 = sbr.rel (0) target = $region37
    $region36: #{tpu_custom_call.1} parent=1 // pred_region
      %969 = dma.done [#allocation4], 2048
    $region37: #{tpu_custom_call.1} parent=1 // pred_fallthru
      _
    %970 = vsyncpa [#allocation3], 1
    %971 = vsyncpa [#allocation6], 1
    %972 = vsyncpa [#allocation4], 1

</llo_original>
